<compile_context>
chip_gen: v7x
topology: tpu7x:2x2x1
jax: 0.10.0
libtpu: 0.0.40
codegen_flags: <defaults>
</compile_context>

<pallas_src>
import functools

import jax
import jax.numpy as jnp
from jax.experimental import pallas as pl
from jax.experimental.pallas import tpu as pltpu


# --------------------------------------------------------------------------
# MLE (cross entropy, ignore_index=-100), tiled over rows
# --------------------------------------------------------------------------
def _mle_kernel(logits_ref, labels_ref, tot_ref, cnt_ref, *, n_total, tn):
    i = pl.program_id(0)
    logits = logits_ref[...].astype(jnp.float32)       # (TN, V)
    labels = labels_ref[...]                           # (TN, 1) int32
    tn_, v = logits.shape

    # Global row ids -> mask out the (possibly garbage) rows of a partial tile.
    row_ids = jax.lax.broadcasted_iota(jnp.int32, (tn_, 1), 0) + i * tn
    valid = jnp.logical_and(row_ids < n_total, labels != -100)   # (TN, 1) bool

    # logsumexp with the gold gather fused into the same pass (no one-hot).
    m = jnp.max(logits, axis=-1, keepdims=True)                  # (TN, 1)
    sumexp = jnp.sum(jnp.exp(logits - m), axis=-1, keepdims=True)
    lse = m + jnp.log(sumexp)                                    # (TN, 1)

    vocab_ids = jax.lax.broadcasted_iota(jnp.int32, (tn_, v), 1)
    gold = jnp.sum(jnp.where(vocab_ids == labels, logits, 0.0),
                   axis=-1, keepdims=True)                       # (TN, 1)

    per_tok = jnp.where(valid, lse - gold, 0.0)                  # (TN, 1)
    vcount = jnp.where(valid, 1.0, 0.0)                          # (TN, 1)

    tot_ref[0] = jnp.sum(per_tok, keepdims=True)                 # (1, 1)
    cnt_ref[0] = jnp.sum(vcount, keepdims=True)                  # (1, 1)


# --------------------------------------------------------------------------
# Contrastive loss, tiled (bsz, S // Tq)
# --------------------------------------------------------------------------
def _cl_kernel(hidden_ref, ids_row_ref, ids_col_ref, num_ref, den_ref, nr_sc,
               *, margin, pad_token_id, tq):
    qi = pl.program_id(1)

    # Normalize the whole (S, D) block once per batch into resident scratch.
    @pl.when(qi == 0)
    def _():
        h = hidden_ref[0].astype(jnp.float32)                    # (S, D)
        inv_norm = jax.lax.rsqrt(jnp.sum(h * h, axis=-1, keepdims=True))
        nr_sc[...] = (h * inv_norm).astype(nr_sc.dtype)

    s = nr_sc.shape[0]
    row_start = pl.multiple_of(qi * tq, tq)
    q_rows = nr_sc[pl.ds(row_start, tq), :]                      # (Tq, D)
    k_all = nr_sc[...]                                           # (S, D)

    # (Tq, S) cosine-score tile on the MXU, f32 accumulation.
    scores = jax.lax.dot_general(
        q_rows, k_all, (((1,), (1,)), ((), ())),
        preferred_element_type=jnp.float32)

    # Diagonal selection via a single iota compare (no eye matrix).
    row_g = jax.lax.broadcasted_iota(jnp.int32, (tq, s), 0) + qi * tq
    col_g = jax.lax.broadcasted_iota(jnp.int32, (tq, s), 1)
    diag = row_g == col_g

    gold = jnp.sum(jnp.where(diag, scores, 0.0), axis=-1, keepdims=True)  # (Tq,1)
    loss_m = jnp.maximum(margin - (gold - scores), 0.0)                   # (Tq,S)

    # Pad masks in both orientations come straight from the two id layouts.
    mask_row = (ids_row_ref[0] != pad_token_id).astype(jnp.float32)       # (1, S)
    mask_col = (ids_col_ref[0] != pad_token_id).astype(jnp.float32)       # (Tq,1)
    loss_mask = jnp.where(diag, 0.0, mask_col * mask_row)                 # (Tq,S)

    num_ref[0] = jnp.sum(loss_m * loss_mask, keepdims=True)               # (1,1)
    den_ref[0] = jnp.sum(loss_mask, keepdims=True)                        # (1,1)


# --------------------------------------------------------------------------
# Wrapper
# --------------------------------------------------------------------------
def _pick_tq(s, target=256):
    """Largest divisor of s that is <= target and (multiple of 8 or == s)."""
    for t in range(min(target, s), 0, -1):
        if s % t == 0 and (t % 8 == 0 or t == s):
            return t
    return s


def simctg_loss(last_hidden_states, logits, input_ids, labels, *,
                margin, vocab_size, pad_token_id):
    bsz, seqlen = input_ids.shape
    embed_dim = last_hidden_states.shape[-1]
    assert labels.shape == input_ids.shape
    assert logits.shape == (bsz, seqlen, vocab_size)

    # ------------------ MLE (cross entropy, ignore_index=-100) ------------------
    n_rows = bsz * seqlen
    v = vocab_size
    # Keep logits in native dtype in HBM (bf16 halves HBM traffic); cast in-kernel.
    flat_logits = logits.reshape(n_rows, v)
    flat_labels = labels.reshape(n_rows, 1).astype(jnp.int32)

    # ~4 MiB logits block per tile, multiple of 8 rows, capped at 256 rows.
    itemsize = flat_logits.dtype.itemsize
    tn = max(8, min(256, (4 * 1024 * 1024) // max(1, v * itemsize)))
    tn -= tn % 8
    if n_rows <= tn:
        tn = n_rows
    n_tiles = pl.cdiv(n_rows, tn)

    # TODO(synk): could add pipeline_mode=pl.Buffered(3) on the logits spec for
    # deeper DMA pipelining on v7x once validated on the target JAX build.
    mle_tot, mle_cnt = pl.pallas_call(
        functools.partial(_mle_kernel, n_total=n_rows, tn=tn),
        out_shape=(jax.ShapeDtypeStruct((n_tiles, 1, 1), jnp.float32),
                   jax.ShapeDtypeStruct((n_tiles, 1, 1), jnp.float32)),
        grid_spec=pltpu.PrefetchScalarGridSpec(
            num_scalar_prefetch=0,
            grid=(n_tiles,),
            in_specs=[pl.BlockSpec((tn, v), lambda i: (i, 0)),
                      pl.BlockSpec((tn, 1), lambda i: (i, 0))],
            out_specs=[pl.BlockSpec((1, 1, 1), lambda i: (i, 0, 0)),
                       pl.BlockSpec((1, 1, 1), lambda i: (i, 0, 0))],
        ),
        compiler_params=pltpu.CompilerParams(
            dimension_semantics=("parallel",)),
    )(flat_logits, flat_labels)
    mle = jnp.sum(mle_tot) / jnp.sum(mle_cnt)

    # ------------------ Contrastive loss ------------------
    s = seqlen
    tq = _pick_tq(s)
    n_qt = s // tq

    ids_row = input_ids.astype(jnp.int32).reshape(bsz, 1, s)
    ids_col = input_ids.astype(jnp.int32).reshape(bsz, s, 1)

    cl_num, cl_den = pl.pallas_call(
        functools.partial(_cl_kernel, margin=float(margin),
                          pad_token_id=int(pad_token_id), tq=tq),
        out_shape=(jax.ShapeDtypeStruct((bsz * n_qt, 1, 1), jnp.float32),
                   jax.ShapeDtypeStruct((bsz * n_qt, 1, 1), jnp.float32)),
        grid_spec=pltpu.PrefetchScalarGridSpec(
            num_scalar_prefetch=0,
            grid=(bsz, n_qt),
            in_specs=[pl.BlockSpec((1, s, embed_dim), lambda b, q: (b, 0, 0)),
                      pl.BlockSpec((1, 1, s), lambda b, q: (b, 0, 0)),
                      pl.BlockSpec((1, tq, 1), lambda b, q: (b, q, 0))],
            out_specs=[pl.BlockSpec((1, 1, 1), lambda b, q: (b * n_qt + q, 0, 0)),
                       pl.BlockSpec((1, 1, 1), lambda b, q: (b * n_qt + q, 0, 0))],
            scratch_shapes=[pltpu.VMEM((s, embed_dim), last_hidden_states.dtype)],
        ),
        compiler_params=pltpu.CompilerParams(
            dimension_semantics=("parallel", "arbitrary")),
    )(last_hidden_states, ids_row, ids_col)
    cl = jnp.sum(cl_num) / jnp.sum(cl_den)

    return mle, cl


# --------------------------------------------------------------------------
# Pure-JAX reference matching the PyTorch forward
# --------------------------------------------------------------------------
def _reference(hidden, logits, input_ids, labels, margin, vocab_size, pad_id):
    lf = logits.astype(jnp.float32).reshape(-1, vocab_size)
    lb = labels.reshape(-1)
    valid = (lb != -100)
    safe_lb = jnp.where(valid, lb, 0)
    lse = jax.nn.logsumexp(lf, axis=-1)
    gold = jnp.take_along_axis(lf, safe_lb[:, None], axis=-1)[:, 0]
    mle = jnp.sum((lse - gold) * valid) / jnp.sum(valid)

    nr = hidden / jnp.linalg.norm(hidden, axis=2, keepdims=True)
    sc = jnp.einsum("bsd,btd->bst", nr, nr)
    g = jnp.diagonal(sc, axis1=1, axis2=2)[..., None]
    lm = jax.nn.relu(margin - (g - sc))
    im = (input_ids != pad_id).astype(jnp.float32)
    slen = input_ids.shape[-1]
    base = 1.0 - jnp.eye(slen)
    lmask = base[None] * im[..., None] * im[:, None, :]
    rs = jnp.sum(lm * lmask, axis=-1) * im
    cl = jnp.sum(rs) / jnp.sum(lmask)
    return mle, cl


if __name__ == "__main__":
    key = jax.random.PRNGKey(0)
    bsz, seqlen, embed_dim, vocab_size = 2, 8, 32, 32
    margin, pad_token_id = 0.5, 0

    k1, k2, k3, k4 = jax.random.split(key, 4)
    hidden = jax.random.normal(k1, (bsz, seqlen, embed_dim), jnp.float32)
    logits = jax.random.normal(k2, (bsz, seqlen, vocab_size), jnp.float32)
    input_ids = jax.random.randint(k3, (bsz, seqlen), 1, vocab_size, dtype=jnp.int32)
    input_ids = input_ids.at[0, -2:].set(pad_token_id)        # some padding tokens
    labels = jax.random.randint(k4, (bsz, seqlen), 0, vocab_size, dtype=jnp.int32)
    labels = labels.at[1, :2].set(-100)                       # some ignored labels

    mle, cl = simctg_loss(hidden, logits, input_ids, labels,
                          margin=margin, vocab_size=vocab_size,
                          pad_token_id=pad_token_id)
    jax.block_until_ready((mle, cl))

    mle_ref, cl_ref = _reference(hidden, logits, input_ids, labels,
                                 margin, vocab_size, pad_token_id)
    assert jnp.allclose(mle, mle_ref, atol=1e-4, rtol=1e-4), (mle, mle_ref)
    assert jnp.allclose(cl, cl_ref, atol=1e-4, rtol=1e-4), (cl, cl_ref)
    print("KERNEL_OK")
</pallas_src>

<mosaic_0001>
module attributes {stable_mosaic.version = 11 : i64} {
  func.func @_mle_kernel(%arg0: i32, %arg1: memref<16x32xf32, #tpu.memory_space<vmem>>, %arg2: memref<16x1xi32, #tpu.memory_space<vmem>>, %arg3: memref<1x1x1xf32, #tpu.memory_space<vmem>>, %arg4: memref<1x1x1xf32, #tpu.memory_space<vmem>>) attributes {dimension_semantics = [#tpu.dimension_semantics<parallel>], iteration_bounds = array<i64: 1>, scalar_prefetch = 0 : i64, scratch_operands = 0 : i64, tpu.core_type = #tpu.core_type<tc>, window_params = [{transform_indices = @transform_0, window_bounds = array<i64: 16, 32>}, {transform_indices = @transform_1, window_bounds = array<i64: 16, 1>}, {transform_indices = @transform_2, window_bounds = array<i64: 1, 1, 1>}, {transform_indices = @transform_3, window_bounds = array<i64: 1, 1, 1>}]} {
    %c0 = arith.constant 0 : index
    %c0_0 = arith.constant 0 : index
    %0 = vector.load %arg1[%c0, %c0_0] : memref<16x32xf32, #tpu.memory_space<vmem>>, vector<16x32xf32>
    %c0_1 = arith.constant 0 : index
    %c0_2 = arith.constant 0 : index
    %1 = vector.load %arg2[%c0_1, %c0_2] : memref<16x1xi32, #tpu.memory_space<vmem>>, vector<16x1xi32>
    %2 = tpu.iota {dimensions = array<i32: 0>} : vector<16x1xi32>
    %c16_i32 = arith.constant 16 : i32
    %3 = arith.muli %arg0, %c16_i32 : i32
    %4 = vector.broadcast %3 : i32 to vector<16x1xi32>
    %5 = arith.addi %2, %4 : vector<16x1xi32>
    %c16_i32_3 = arith.constant 16 : i32
    %6 = vector.broadcast %c16_i32_3 : i32 to vector<16x1xi32>
    %7 = arith.cmpi slt, %5, %6 : vector<16x1xi32>
    %c-100_i32 = arith.constant -100 : i32
    %8 = vector.broadcast %c-100_i32 : i32 to vector<16x1xi32>
    %9 = arith.cmpi ne, %1, %8 : vector<16x1xi32>
    %10 = arith.andi %7, %9 : vector<16x1xi1>
    %cst = arith.constant dense<0xFF800000> : vector<16xf32>
    %11 = vector.multi_reduction <maximumf>, %0, %cst [1] : vector<16x32xf32> to vector<16xf32>
    %12 = vector.shape_cast %11 : vector<16xf32> to vector<16x1xf32>
    %13 = vector.broadcast %12 : vector<16x1xf32> to vector<16x32xf32>
    %14 = arith.subf %0, %13 : vector<16x32xf32>
    %15 = math.exp %14 : vector<16x32xf32>
    %cst_4 = arith.constant dense<0.000000e+00> : vector<16xf32>
    %16 = vector.multi_reduction <add>, %15, %cst_4 [1] : vector<16x32xf32> to vector<16xf32>
    %17 = vector.shape_cast %16 : vector<16xf32> to vector<16x1xf32>
    %18 = math.log %17 : vector<16x1xf32>
    %19 = arith.addf %12, %18 : vector<16x1xf32>
    %20 = tpu.iota {dimensions = array<i32: 1>} : vector<16x32xi32>
    %21 = vector.broadcast %1 : vector<16x1xi32> to vector<16x32xi32>
    %22 = arith.cmpi eq, %20, %21 : vector<16x32xi32>
    %cst_5 = arith.constant 0.000000e+00 : f32
    %23 = vector.broadcast %cst_5 : f32 to vector<16x32xf32>
    %24 = arith.select %22, %0, %23 : vector<16x32xi1>, vector<16x32xf32>
    %cst_6 = arith.constant dense<0.000000e+00> : vector<16xf32>
    %25 = vector.multi_reduction <add>, %24, %cst_6 [1] : vector<16x32xf32> to vector<16xf32>
    %26 = vector.shape_cast %25 : vector<16xf32> to vector<16x1xf32>
    %27 = arith.subf %19, %26 : vector<16x1xf32>
    %cst_7 = arith.constant 0.000000e+00 : f32
    %28 = vector.broadcast %cst_7 : f32 to vector<16x1xf32>
    %29 = arith.select %10, %27, %28 : vector<16x1xi1>, vector<16x1xf32>
    %cst_8 = arith.constant 1.000000e+00 : f32
    %cst_9 = arith.constant 0.000000e+00 : f32
    %30 = vector.broadcast %cst_8 : f32 to vector<16x1xf32>
    %31 = vector.broadcast %cst_9 : f32 to vector<16x1xf32>
    %32 = arith.select %10, %30, %31 : vector<16x1xi1>, vector<16x1xf32>
    %33 = vector.shape_cast %29 : vector<16x1xf32> to vector<1x16x1xf32>
    %cst_10 = arith.constant dense<0.000000e+00> : vector<1xf32>
    %34 = vector.multi_reduction <add>, %33, %cst_10 [1, 2] : vector<1x16x1xf32> to vector<1xf32>
    %35 = vector.shape_cast %34 : vector<1xf32> to vector<1x1x1xf32>
    %36 = vector.extract %35[0, 0, 0] : f32 from vector<1x1x1xf32>
    %37 = vector.broadcast %36 : f32 to vector<1x1xf32>
    %c0_11 = arith.constant 0 : index
    %c0_12 = arith.constant 0 : index
    %c0_13 = arith.constant 0 : index
    %38 = vector.load %arg3[%c0_11, %c0_12, %c0_13] : memref<1x1x1xf32, #tpu.memory_space<vmem>>, vector<1x1x1xf32>
    %39 = vector.shape_cast %38 : vector<1x1x1xf32> to vector<1x1xf32>
    %40 = vector.shape_cast %37 : vector<1x1xf32> to vector<1x1x1xf32>
    tpu.vector_store %arg3[%c0_11, %c0_12, %c0_13], %40 {strides = array<i32>} : memref<1x1x1xf32, #tpu.memory_space<vmem>>, vector<1x1x1xf32>,
    %41 = vector.shape_cast %32 : vector<16x1xf32> to vector<1x16x1xf32>
    %cst_14 = arith.constant dense<0.000000e+00> : vector<1xf32>
    %42 = vector.multi_reduction <add>, %41, %cst_14 [1, 2] : vector<1x16x1xf32> to vector<1xf32>
    %43 = vector.shape_cast %42 : vector<1xf32> to vector<1x1x1xf32>
    %44 = vector.extract %43[0, 0, 0] : f32 from vector<1x1x1xf32>
    %45 = vector.broadcast %44 : f32 to vector<1x1xf32>
    %c0_15 = arith.constant 0 : index
    %c0_16 = arith.constant 0 : index
    %c0_17 = arith.constant 0 : index
    %46 = vector.load %arg4[%c0_15, %c0_16, %c0_17] : memref<1x1x1xf32, #tpu.memory_space<vmem>>, vector<1x1x1xf32>
    %47 = vector.shape_cast %46 : vector<1x1x1xf32> to vector<1x1xf32>
    %48 = vector.shape_cast %45 : vector<1x1xf32> to vector<1x1x1xf32>
    tpu.vector_store %arg4[%c0_15, %c0_16, %c0_17], %48 {strides = array<i32>} : memref<1x1x1xf32, #tpu.memory_space<vmem>>, vector<1x1x1xf32>,
    return
  }
  func.func @transform_0(%arg0: i32) -> (i32, i32) {
    %c0_i32 = arith.constant 0 : i32
    %c0_i32_0 = arith.constant 0 : i32
    return %arg0, %c0_i32 : i32, i32
  }
  func.func @transform_1(%arg0: i32) -> (i32, i32) {
    %c0_i32 = arith.constant 0 : i32
    %c0_i32_0 = arith.constant 0 : i32
    return %arg0, %c0_i32 : i32, i32
  }
  func.func @transform_2(%arg0: i32) -> (i32, i32, i32) {
    %c0_i32 = arith.constant 0 : i32
    %c0_i32_0 = arith.constant 0 : i32
    %c0_i32_1 = arith.constant 0 : i32
    return %arg0, %c0_i32, %c0_i32_0 : i32, i32, i32
  }
  func.func @transform_3(%arg0: i32) -> (i32, i32, i32) {
    %c0_i32 = arith.constant 0 : i32
    %c0_i32_0 = arith.constant 0 : i32
    %c0_i32_1 = arith.constant 0 : i32
    return %arg0, %c0_i32, %c0_i32_0 : i32, i32, i32
  }
}

</mosaic_0001>

<llo_original>
// kernel: tpu_custom_call.1
$region0: #{tpu_custom_call.1}
  #allocation0 [shape = 'u32[]', space=smem, size = 0x4, offset = 0x4, fixed_abs, tag = 'smem constant byte address 0x4 - core index']
  #allocation1 [shape = 'u32[144,128]{1,0:T(1,128)}', space=vmem, size = 0x12000, scoped, tag = 'internal scratch']
  %s0 = inlined_call_operand.vmem [shape: f32[16,32], index: 0, kind: input, shape index: {}]
  %s1 = inlined_call_operand.vmem [shape: s32[16,1], index: 1, kind: input, shape index: {}]
  %s2 = inlined_call_operand.hbm [shape: f32[1,1,1], index: 2, kind: output, shape index: {0}]
  %s3 = inlined_call_operand.hbm [shape: f32[1,1,1], index: 3, kind: output, shape index: {1}]
  %4 = xla_tuple %s2, %s3
  %s5 = sld [smem:[#allocation0]]
  $region26: #{tpu_custom_call.1} parent=0
    _
  %s7 = ssub.s32 1, %s5
  %s8 = scalar_select 0, %s7, %s5
  $region1: #{tpu_custom_call.1} parent=0
    #allocation2 [shape = 'u8[512]{0}', space=vmem, size = 0x400, scoped, tag = 'output window, operand 0, single buffered']
    #allocation3 [shape = 's32[1]{0}', space=sflag, size = 0x4, scoped, tag = 'scoped memory for tpu_custom_call.1']
    #allocation4 [shape = 'u8[512]{0}', space=vmem, size = 0x400, scoped, tag = 'output window, operand 1, single buffered']
    #allocation5 [shape = 's32[1]{0}', space=sflag, size = 0x4, scoped, tag = 'scoped memory for tpu_custom_call.1']
    %9 = vsyncpa [#allocation3], 0
    %10 = vsyncpa [#allocation5], 0
    // Predicated region
    $region2: #{tpu_custom_call.1} parent=1 // pred_check
      _
    $region3: #{tpu_custom_call.1} parent=1 // pred_check_branch
      %12 = sbr.rel (0) target = $region5
    $region4: #{tpu_custom_call.1} parent=1 // pred_region
      _
    $region5: #{tpu_custom_call.1} parent=1 // pred_fallthru
      _
    // Predicated region
    $region6: #{tpu_custom_call.1} parent=1 // pred_check
      _
    $region7: #{tpu_custom_call.1} parent=1 // pred_check_branch
      %14 = sbr.rel (0) target = $region9
    $region8: #{tpu_custom_call.1} parent=1 // pred_region
      _
    $region9: #{tpu_custom_call.1} parent=1 // pred_fallthru
      _
    %v15 = vld [vmem:[%s0] sm:$0xff]
    %v16 = vld [vmem:[%s0 + $0x8] sm:$0xff]
    %v17 = vld [vmem:[%s1] sm:$0xff]
    %v18 = vld [vmem:[%s1 + $0x8] sm:$0xff]
    %v19 = vlaneseq
    %v20 = vshrl.u32 %v19, 7
    %v21 = vadd.s32 %v20, 8
    %s22 = smul.u32 0, 16
    %v23 = vstv %s22
    %v24 = vadd.s32 %v20, %v23
    %v25 = vadd.s32 %v21, %v23
    %vm26 = vcmp.lt.s32.totalorder %v24, 16
    %vm27 = vcmp.lt.s32.totalorder %v25, 16
    %vm28 = vcmp.ne.s32.totalorder %v17, 4294967196
    %vm29 = vcmp.ne.s32.totalorder %v18, 4294967196
    %vm30 = vmand %vm26, %vm28
    %vm31 = vmand %vm27, %vm29
    %vm32 = vcmask 261120
    %v33 = vsel %vm32, %v15, -inf
    %34 = vmax.xlane.f32.xlu0 %v33
    %v35 = vpop.xlane.xlu0 %34
    %v36 = vsel %vm32, %v16, -inf
    %37 = vmax.xlane.f32.xlu0 %v36
    %v38 = vpop.xlane.xlu0 %37
    %v39 = vsub.f32 %v15, %v35
    %v40 = vsub.f32 %v16, %v38
    %v41 = vmul.f32 %v39, 1.442695
    %v42 = vpow.pop %v41
    %v43 = vmul.f32 %v40, 1.442695
    %v44 = vpow.pop %v43
    %v45 = vsel %vm32, %v42, 0.0
    %46 = vadd.xlane.f32.xlu0 %v45
    %v47 = vpop.xlane.xlu0 %46
    %v48 = vsel %vm32, %v44, 0.0
    %49 = vadd.xlane.f32.xlu0 %v48
    %v50 = vpop.xlane.xlu0 %49
    %v51 = vlog2.pop %v47
    %v52 = vmul.f32 %v51, 0.6931472
    %v53 = vlog2.pop %v50
    %v54 = vmul.f32 %v53, 0.6931472
    %v55 = vadd.f32 %v35, %v52
    %v56 = vadd.f32 %v38, %v54
    %v57 = vlaneseq
    %v58 = vand.u32 %v57, 127
    %59 = vset.pattern.permute.xlu0 0
    %60 = vperm.xlu0 %59, %v17
    %v61 = vpop.permute.xlu0 %60
    %62 = vset.pattern.permute.xlu0 0
    %63 = vperm.xlu0 %62, %v18
    %v64 = vpop.permute.xlu0 %63
    %vm65 = vcmp.eq.s32.totalorder %v58, %v61
    %vm66 = vcmp.eq.s32.totalorder %v58, %v64
    %v67 = vsel %vm65, %v15, 0.0
    %v68 = vsel %vm66, %v16, 0.0
    %v69 = vsel %vm32, %v67, 0.0
    %70 = vadd.xlane.f32.xlu0 %v69
    %v71 = vpop.xlane.xlu0 %70
    %v72 = vsel %vm32, %v68, 0.0
    %73 = vadd.xlane.f32.xlu0 %v72
    %v74 = vpop.xlane.xlu0 %73
    %v75 = vsub.f32 %v55, %v71
    %v76 = vsub.f32 %v56, %v74
    %v77 = vsel %vm30, %v75, 0.0
    %v78 = vsel %vm31, %v76, 0.0
    %v79 = vsel %vm30, 1.0, 0.0
    %v80 = vsel %vm31, 1.0, 0.0
    %vm81 = vcmask 7168
    %v82 = vsel %vm81, %v77, 0.0
    %v83 = vsel %vm81, %v78, 0.0
    %v84 = vadd.f32 %v82, %v83
    %85 = vadd.xlane.f32.xlu0 %v84
    %v86 = vpop.xlane.xlu0 %85
    %v87 = vrot.slane %v86, 4
    %v88 = vadd.f32 %v86, %v87
    %v89 = vrot.slane %v88, 2
    %v90 = vadd.f32 %v88, %v89
    %v91 = vrot.slane %v90, 1
    %v92 = vadd.f32 %v90, %v91
    %s93 = vtos %v92
    %v94 = vstv %s93
    %vm95 = vcmask 0
    %96 = vst.msk [vmem:[#allocation2] sm:$0x1] %vm95, %v94
    %v97 = vsel %vm81, %v79, 0.0
    %v98 = vsel %vm81, %v80, 0.0
    %v99 = vadd.f32 %v97, %v98
    %100 = vadd.xlane.f32.xlu0 %v99
    %v101 = vpop.xlane.xlu0 %100
    %v102 = vrot.slane %v101, 4
    %v103 = vadd.f32 %v101, %v102
    %v104 = vrot.slane %v103, 2
    %v105 = vadd.f32 %v103, %v104
    %v106 = vrot.slane %v105, 1
    %v107 = vadd.f32 %v105, %v106
    %s108 = vtos %v107
    %v109 = vstv %s108
    %110 = vst.msk [vmem:[#allocation4] sm:$0x1] %vm95, %v109
    // Predicated region
    $region10: #{tpu_custom_call.1} parent=1 // pred_check
      _
    $region11: #{tpu_custom_call.1} parent=1 // pred_check_branch
      %112 = sbr.rel (0) target = $region13
    $region12: #{tpu_custom_call.1} parent=1 // pred_region
      %s114 = ssub.s32 16, 16
      %115 = vsyncadd [#allocation3], %s114
      %s117 = sshll.u32 [#allocation2], 4
      %s118 = int_to_ptr.vmem [resolvable:$true] %s117
      %120 = dma.vmem_to_hbm [thread:$0]  %s118, 16, %s2, [#allocation3]
    $region13: #{tpu_custom_call.1} parent=1 // pred_fallthru
      _
    // Predicated region
    $region14: #{tpu_custom_call.1} parent=1 // pred_check
      _
    $region15: #{tpu_custom_call.1} parent=1 // pred_check_branch
      %122 = sbr.rel (0) target = $region17
    $region16: #{tpu_custom_call.1} parent=1 // pred_region
      %s124 = ssub.s32 16, 16
      %125 = vsyncadd [#allocation5], %s124
      %s127 = sshll.u32 [#allocation4], 4
      %s128 = int_to_ptr.vmem [resolvable:$true] %s127
      %130 = dma.vmem_to_hbm [thread:$0]  %s128, 16, %s3, [#allocation5]
    $region17: #{tpu_custom_call.1} parent=1 // pred_fallthru
      _
    // Predicated region
    $region18: #{tpu_custom_call.1} parent=1 // pred_check
      _
    $region19: #{tpu_custom_call.1} parent=1 // pred_check_branch
      %132 = sbr.rel (0) target = $region21
    $region20: #{tpu_custom_call.1} parent=1 // pred_region
      %133 = dma.done [#allocation3], 16
    $region21: #{tpu_custom_call.1} parent=1 // pred_fallthru
      _
    // Predicated region
    $region22: #{tpu_custom_call.1} parent=1 // pred_check
      _
    $region23: #{tpu_custom_call.1} parent=1 // pred_check_branch
      %135 = sbr.rel (0) target = $region25
    $region24: #{tpu_custom_call.1} parent=1 // pred_region
      %136 = dma.done [#allocation5], 16
    $region25: #{tpu_custom_call.1} parent=1 // pred_fallthru
      _
    %137 = vsyncpa [#allocation3], 1
    %138 = vsyncpa [#allocation5], 1

</llo_original>
